<compile_context>
chip_gen: v7x
topology: tpu7x:2x2x1
jax: 0.10.0
libtpu: 0.0.40
codegen_flags: <defaults>
</compile_context>

<pallas_src>
import functools

import jax
import jax.numpy as jnp
from jax.experimental import pallas as pl
from jax.experimental.pallas import tpu as pltpu

LANE = 128      # lane width: action (output) dims padded to this
HIDDEN = 128    # hidden size of the reference module (nn.Linear(state_dim, 128))
TB = 1024       # batch tile for the grid path (multiple of 8)


def _round_up(n, m):
    return ((n + m - 1) // m) * m


def _pipelined_spec(block_shape, index_map, depth=3):
    """x BlockSpec with depth-3 pipelining when the installed JAX supports it."""
    if hasattr(pl, "Buffered"):
        try:
            return pl.BlockSpec(block_shape, index_map,
                                pipeline_mode=pl.Buffered(depth))
        except TypeError:
            pass
    return pl.BlockSpec(block_shape, index_map)


# -----------------------------------------------------------------------------
# Kernels
# -----------------------------------------------------------------------------
def _mlp_kernel(x_ref, w1_ref, b1_ref, w2_ref, b2_ref, o_ref):
    """Fused Linear -> ReLU -> Linear on one (rows, D) tile (single head)."""
    h = jnp.dot(x_ref[...], w1_ref[...], preferred_element_type=jnp.float32)
    h = jnp.maximum(h + b1_ref[...], 0.0)          # (rows,H) + (1,H) broadcast
    h = h.astype(w2_ref.dtype)                     # MXU-friendly second matmul
    o = jnp.dot(h, w2_ref[...], preferred_element_type=jnp.float32)
    o_ref[...] = (o + b2_ref[...]).astype(o_ref.dtype)


def _mlp_both_kernel(x_ref, w1_ref, b1_ref, w2d_ref, b2d_ref, w2s_ref, b2s_ref,
                     o_ref):
    """Both heads fused: one first-layer matmul over the concatenated W1, then
    two second-layer dots on slices of h (exact; no zero-multiplying work)."""
    h = jnp.dot(x_ref[...], w1_ref[...], preferred_element_type=jnp.float32)
    h = jnp.maximum(h + b1_ref[...], 0.0).astype(w2d_ref.dtype)   # (rows, 2H)
    ad = w2d_ref.shape[1]
    od = jnp.dot(h[:, :HIDDEN], w2d_ref[...], preferred_element_type=jnp.float32)
    osr = jnp.dot(h[:, HIDDEN:], w2s_ref[...], preferred_element_type=jnp.float32)
    o_ref[:, :ad] = (od + b2d_ref[...]).astype(o_ref.dtype)
    o_ref[:, ad:] = (osr + b2s_ref[...]).astype(o_ref.dtype)


# -----------------------------------------------------------------------------
# pallas_call wrapper (shared by single-head and both-head paths)
# -----------------------------------------------------------------------------
@functools.partial(jax.jit, static_argnums=(0, 1))
def _mlp_call(kernel, a_out, x, *params):
    """Runs `kernel` on x with the given (already packed) parameters.

    Small batches -> gridless whole-array VMEM call (no grid machinery).
    Large batches -> batch-tiled grid (TB rows/step); weights stay resident
    via constant index_maps; batch axis is "parallel"."""
    w1 = params[0]
    d_in = w1.shape[0]
    B, D = x.shape

    x = x.astype(w1.dtype)
    if D < d_in:                               # <= 7 cols of sublane rounding
        x = jnp.pad(x, ((0, 0), (0, d_in - D)))

    n_p = len(params)

    if B > TB:
        B8 = _round_up(B, 8)
        if B8 != B:
            x = jnp.pad(x, ((0, B8 - B), (0, 0)))
        in_specs = [_pipelined_spec((TB, d_in), lambda i: (i, 0))]
        in_specs += [pl.BlockSpec(p.shape, lambda i: (0, 0)) for p in params]
        out = pl.pallas_call(
            kernel,
            out_shape=jax.ShapeDtypeStruct((B8, a_out), jnp.float32),
            grid=(pl.cdiv(B8, TB),),
            in_specs=in_specs,
            out_specs=pl.BlockSpec((TB, a_out), lambda i: (i, 0)),
            compiler_params=pltpu.CompilerParams(
                dimension_semantics=("parallel",),
                vmem_limit_bytes=32 * 1024 * 1024,
                allow_input_fusion=[True] + [False] * n_p,
            ),
        )(x, *params)
        return out[:B] if B8 != B else out

    # Small batch: gridless whole-array VMEM call.
    vmem = pl.BlockSpec(memory_space=pltpu.MemorySpace.VMEM)
    return pl.pallas_call(
        kernel,
        out_shape=jax.ShapeDtypeStruct((B, a_out), jnp.float32),
        in_specs=[vmem] * (1 + n_p),
        out_specs=vmem,
    )(x, *params)


# -----------------------------------------------------------------------------
# Parameter construction (PyTorch nn.Linear default init), packed for the TPU.
# -----------------------------------------------------------------------------
def _linear_init(key, out_dim, in_dim):
    """PyTorch nn.Linear default init: U(-1/sqrt(fan_in), 1/sqrt(fan_in))."""
    kw, kb = jax.random.split(key)
    bound = 1.0 / (in_dim ** 0.5)
    w = jax.random.uniform(kw, (out_dim, in_dim), jnp.float32, -bound, bound)
    b = jax.random.uniform(kb, (out_dim,), jnp.float32, -bound, bound)
    return w, b


def _pack_head(w1, b1, w2, b2, d8, a_pad, param_dtype):
    """Transpose to (in, out) layout; pad D to a multiple of 8 only and the
    action dim to a lane-dense multiple of 128."""
    h = w1.shape[0]
    w1t = jnp.zeros((d8, h), param_dtype).at[: w1.shape[1], :].set(
        w1.T.astype(param_dtype))
    b1r = b1.reshape(1, -1).astype(jnp.float32)
    w2t = jnp.zeros((h, a_pad), param_dtype).at[:, : w2.shape[0]].set(
        w2.T.astype(param_dtype))
    b2r = jnp.zeros((1, a_pad), jnp.float32).at[0, : b2.shape[0]].set(
        b2.astype(jnp.float32))
    return w1t, b1r, w2t, b2r


class FirstModelPallas:
    """JAX/Pallas port of FirstModel: two 2-layer MLP heads over the same input.

    forward(state, 'dice'|'score') matches the PyTorch module.  When both heads
    are needed on the same state, forward_both() does it in a single fused
    pallas_call (preferred: halves launches and weight DMA, fills the MXU)."""

    def __init__(self, state_dim_dice, action_dim_dice, action_dim_score,
                 key=jax.random.PRNGKey(0), param_dtype=jnp.bfloat16):
        self.state_dim = state_dim_dice
        self.action_dim_dice = action_dim_dice
        self.action_dim_score = action_dim_score
        self.d8 = _round_up(state_dim_dice, 8)
        self.a_pad_dice = _round_up(action_dim_dice, LANE)
        self.a_pad_score = _round_up(action_dim_score, LANE)

        k1, k2, k3, k4 = jax.random.split(key, 4)
        w1d, b1d = _linear_init(k1, HIDDEN, state_dim_dice)    # fc_dice
        w1s, b1s = _linear_init(k2, HIDDEN, state_dim_dice)    # fc_score
        w2d, b2d = _linear_init(k3, action_dim_dice, HIDDEN)   # fc_out_dice
        w2s, b2s = _linear_init(k4, action_dim_score, HIDDEN)  # fc_out_score

        self.dice = _pack_head(w1d, b1d, w2d, b2d,
                               self.d8, self.a_pad_dice, param_dtype)
        self.score = _pack_head(w1s, b1s, w2s, b2s,
                                self.d8, self.a_pad_score, param_dtype)

        # Fused two-head parameters: concatenated W1; the two W2s are kept
        # separate and applied to h slices inside the kernel (exact, and avoids
        # the 2x zero-work of a block-diagonal W2 on v5e's 128x128 MXU).
        w1_both = jnp.concatenate([self.dice[0], self.score[0]], axis=1)  # (d8,2H)
        b1_both = jnp.concatenate([self.dice[1], self.score[1]], axis=1)  # (1,2H)
        self.both = (w1_both, b1_both,
                     self.dice[2], self.dice[3],      # w2_dice,  b2_dice
                     self.score[2], self.score[3])    # w2_score, b2_score

    def forward(self, state, state_type):
        if state_type == 'dice':
            out = _mlp_call(_mlp_kernel, self.a_pad_dice, state, *self.dice)
            return out[:, : self.action_dim_dice]
        elif state_type == 'score':
            out = _mlp_call(_mlp_kernel, self.a_pad_score, state, *self.score)
            return out[:, : self.action_dim_score]
        else:
            raise ValueError(f"unknown state_type: {state_type}")

    def forward_both(self, state):
        """Evaluate both heads with a single fused pallas_call."""
        a_out = self.a_pad_dice + self.a_pad_score
        out = _mlp_call(_mlp_both_kernel, a_out, state, *self.both)
        dice = out[:, : self.action_dim_dice]
        score = out[:, self.a_pad_dice: self.a_pad_dice + self.action_dim_score]
        return dice, score

    __call__ = forward


if __name__ == "__main__":
    batch = 8
    state_dim_dice = 32
    action_dim_dice = 32
    action_dim_score = 16

    key = jax.random.PRNGKey(0)
    k_model, k_state, k_big = jax.random.split(key, 3)

    state = jax.random.normal(k_state, (batch, state_dim_dice), jnp.float32)
    big_state = jax.random.normal(k_big, (2500, state_dim_dice), jnp.float32)

    def ref_head(x, params, a_dim, cast):
        """Plain-JAX reference with the same cast/accumulate behaviour."""
        w1, b1, w2, b2 = params
        xp = x
        if xp.shape[1] < w1.shape[0]:
            xp = jnp.pad(xp, ((0, 0), (0, w1.shape[0] - xp.shape[1])))
        xp = xp.astype(cast)
        h = jnp.dot(xp, w1.astype(cast), preferred_element_type=jnp.float32) + b1
        h = jnp.maximum(h, 0.0).astype(cast)
        o = jnp.dot(h, w2.astype(cast), preferred_element_type=jnp.float32) + b2
        return o[:, :a_dim]

    # ---- exact f32-parameter path (matches the PyTorch f32 module) ----------
    m32 = FirstModelPallas(state_dim_dice, action_dim_dice, action_dim_score,
                           key=k_model, param_dtype=jnp.float32)
    out_d = m32(state, 'dice')
    out_s = m32(state, 'score')
    both_d, both_s = m32.forward_both(state)
    big_out = m32(big_state, 'dice')           # exercises the grid path
    jax.block_until_ready((out_d, out_s, both_d, both_s, big_out))

    ref_d = ref_head(state, m32.dice, action_dim_dice, jnp.float32)
    ref_s = ref_head(state, m32.score, action_dim_score, jnp.float32)
    ref_big = ref_head(big_state, m32.dice, action_dim_dice, jnp.float32)

    assert out_d.shape == (batch, action_dim_dice)
    assert out_s.shape == (batch, action_dim_score)
    assert big_out.shape == (2500, action_dim_dice)
    assert jnp.allclose(out_d, ref_d, atol=1e-4, rtol=1e-4)
    assert jnp.allclose(out_s, ref_s, atol=1e-4, rtol=1e-4)
    assert jnp.allclose(both_d, ref_d, atol=1e-4, rtol=1e-4)
    assert jnp.allclose(both_s, ref_s, atol=1e-4, rtol=1e-4)
    assert jnp.allclose(big_out, ref_big, atol=1e-4, rtol=1e-4)

    # ---- default bf16-parameter path (perf config; matched-precision ref) ---
    mbf = FirstModelPallas(state_dim_dice, action_dim_dice, action_dim_score,
                           key=k_model)        # param_dtype = bfloat16
    out_d16 = mbf(state, 'dice')
    both_d16, both_s16 = mbf.forward_both(state)
    big_s16 = mbf(big_state, 'score')          # bf16 grid path
    jax.block_until_ready((out_d16, both_d16, both_s16, big_s16))

    ref_d16 = ref_head(state, mbf.dice, action_dim_dice, jnp.bfloat16)
    ref_s16 = ref_head(state, mbf.score, action_dim_score, jnp.bfloat16)
    ref_big_s16 = ref_head(big_state, mbf.score, action_dim_score, jnp.bfloat16)
    assert jnp.allclose(out_d16, ref_d16, atol=2e-2, rtol=2e-2)
    assert jnp.allclose(both_d16, ref_d16, atol=2e-2, rtol=2e-2)
    assert jnp.allclose(both_s16, ref_s16, atol=2e-2, rtol=2e-2)
    assert jnp.allclose(big_s16, ref_big_s16, atol=2e-2, rtol=2e-2)

    print("KERNEL_OK")
</pallas_src>

<mosaic_0001>
module attributes {stable_mosaic.version = 11 : i64} {
  func.func @_mlp_kernel(%arg0: memref<8x32xf32, #tpu.memory_space<vmem>>, %arg1: memref<32x128xf32, #tpu.memory_space<vmem>>, %arg2: memref<1x128xf32, #tpu.memory_space<vmem>>, %arg3: memref<128x128xf32, #tpu.memory_space<vmem>>, %arg4: memref<1x128xf32, #tpu.memory_space<vmem>>, %arg5: memref<8x128xf32, #tpu.memory_space<vmem>>) attributes {dimension_semantics = [], scalar_prefetch = 0 : i64, scratch_operands = 0 : i64, tpu.core_type = #tpu.core_type<tc>} {
    %c0 = arith.constant 0 : index
    %c0_0 = arith.constant 0 : index
    %0 = vector.load %arg0[%c0, %c0_0] : memref<8x32xf32, #tpu.memory_space<vmem>>, vector<8x32xf32>
    %c0_1 = arith.constant 0 : index
    %c0_2 = arith.constant 0 : index
    %1 = vector.load %arg1[%c0_1, %c0_2] : memref<32x128xf32, #tpu.memory_space<vmem>>, vector<32x128xf32>
    %cst = arith.constant dense<0.000000e+00> : vector<8x128xf32>
    %2 = tpu.matmul %0, %1, %cst {dimension_numbers = #tpu.dot_dimension_numbers<[1], [0], [0], [1], [0, 0, 1, 1], [], []>} : vector<8x32xf32>, vector<32x128xf32>, vector<8x128xf32> -> vector<8x128xf32>
    %c0_3 = arith.constant 0 : index
    %c0_4 = arith.constant 0 : index
    %3 = vector.load %arg2[%c0_3, %c0_4] : memref<1x128xf32, #tpu.memory_space<vmem>>, vector<1x128xf32>
    %4 = vector.broadcast %3 : vector<1x128xf32> to vector<8x128xf32>
    %5 = arith.addf %2, %4 : vector<8x128xf32>
    %cst_5 = arith.constant 0.000000e+00 : f32
    %6 = vector.broadcast %cst_5 : f32 to vector<8x128xf32>
    %7 = arith.maximumf %5, %6 : vector<8x128xf32>
    %c0_6 = arith.constant 0 : index
    %c0_7 = arith.constant 0 : index
    %8 = vector.load %arg3[%c0_6, %c0_7] : memref<128x128xf32, #tpu.memory_space<vmem>>, vector<128x128xf32>
    %cst_8 = arith.constant dense<0.000000e+00> : vector<8x128xf32>
    %9 = tpu.matmul %7, %8, %cst_8 {dimension_numbers = #tpu.dot_dimension_numbers<[1], [0], [0], [1], [0, 0, 1, 1], [], []>} : vector<8x128xf32>, vector<128x128xf32>, vector<8x128xf32> -> vector<8x128xf32>
    %c0_9 = arith.constant 0 : index
    %c0_10 = arith.constant 0 : index
    %10 = vector.load %arg4[%c0_9, %c0_10] : memref<1x128xf32, #tpu.memory_space<vmem>>, vector<1x128xf32>
    %11 = vector.broadcast %10 : vector<1x128xf32> to vector<8x128xf32>
    %12 = arith.addf %9, %11 : vector<8x128xf32>
    %c0_11 = arith.constant 0 : index
    %c0_12 = arith.constant 0 : index
    %13 = vector.load %arg5[%c0_11, %c0_12] : memref<8x128xf32, #tpu.memory_space<vmem>>, vector<8x128xf32>
    tpu.vector_store %arg5[%c0_11, %c0_12], %12 {strides = array<i32>} : memref<8x128xf32, #tpu.memory_space<vmem>>, vector<8x128xf32>,
    return
  }
}

</mosaic_0001>

<llo_original>
// kernel: _mlp_call.1
$region0: #{_mlp_call.1}
  #allocation0 [shape = 'u32[]', space=smem, size = 0x4, offset = 0x4, fixed_abs, tag = 'smem constant byte address 0x4 - core index']
  #allocation1 [shape = 'u32[144,128]{1,0:T(1,128)}', space=vmem, size = 0x12000, scoped, tag = 'internal scratch']
  %s0 = inlined_call_operand.hbm [shape: f32[8,32], index: 0, kind: input, shape index: {}]
  %s1 = inlined_call_operand.hbm [shape: f32[32,128], index: 1, kind: input, shape index: {}]
  %s2 = inlined_call_operand.vmem [shape: f32[1,128], index: 2, kind: input, shape index: {}]
  %s3 = inlined_call_operand.hbm [shape: f32[128,128], index: 3, kind: input, shape index: {}]
  %s4 = inlined_call_operand.vmem [shape: f32[1,128], index: 4, kind: input, shape index: {}]
  %s5 = inlined_call_operand.hbm [shape: f32[8,128], index: 5, kind: output, shape index: {}]
  %s6 = sld [smem:[#allocation0]]
  $region42: #{_mlp_call.1} parent=0
    _
  %s8 = ssub.s32 1, %s6
  %s9 = scalar_select 0, %s8, %s6
  $region1: #{_mlp_call.1} parent=0
    #allocation2 [shape = 'u8[4096]{0}', space=vmem, size = 0x1000, scoped, tag = 'input window, operand 0, single buffered']
    #allocation3 [shape = 's32[1]{0}', space=sflag, size = 0x4, scoped, tag = 'scoped memory for _mlp_call.1']
    #allocation4 [shape = 's32[1]{0}', space=sflag, size = 0x4, scoped, tag = 'scoped memory for _mlp_call.1']
    #allocation5 [shape = 'u8[16384]{0}', space=vmem, size = 0x4000, scoped, tag = 'input window, operand 1, single buffered']
    #allocation6 [shape = 's32[1]{0}', space=sflag, size = 0x4, scoped, tag = 'scoped memory for _mlp_call.1']
    #allocation7 [shape = 'u8[65536]{0}', space=vmem, size = 0x10000, scoped, tag = 'input window, operand 3, single buffered']
    #allocation8 [shape = 'u8[4096]{0}', space=vmem, size = 0x1000, scoped, tag = 'output window, operand 0, single buffered']
    %10 = vsyncpa [#allocation3], 0
    %11 = vsyncpa [#allocation6], 0
    %12 = vsyncpa [#allocation4], 0
    // Predicated region
    $region2: #{_mlp_call.1} parent=1 // pred_check
      _
    $region3: #{_mlp_call.1} parent=1 // pred_check_branch
      %14 = sbr.rel (0) target = $region5
    $region4: #{_mlp_call.1} parent=1 // pred_region
      %s16 = ssub.s32 128, 128
      %17 = vsyncadd [#allocation3], %s16
      %s19 = sshll.u32 [#allocation2], 4
      %s20 = int_to_ptr.vmem [resolvable:$true] %s19
      %22 = dma.hbm_to_vmem [thread:$0]  %s0, 128, %s20, [#allocation3]
    $region5: #{_mlp_call.1} parent=1 // pred_fallthru
      _
    // Predicated region
    $region6: #{_mlp_call.1} parent=1 // pred_check
      _
    $region7: #{_mlp_call.1} parent=1 // pred_check_branch
      %24 = sbr.rel (0) target = $region9
    $region8: #{_mlp_call.1} parent=1 // pred_region
      %s26 = ssub.s32 512, 512
      %27 = vsyncadd [#allocation6], %s26
      %s28 = sshll.u32 [#allocation5], 4
      %s29 = int_to_ptr.vmem [resolvable:$true] %s28
      %34 = dma.hbm_to_vmem [thread:$0]  %s1, 512, %s29, [#allocation6], 128, 128, 8
    $region9: #{_mlp_call.1} parent=1 // pred_fallthru
      _
    // Predicated region
    $region10: #{_mlp_call.1} parent=1 // pred_check
      _
    $region11: #{_mlp_call.1} parent=1 // pred_check_branch
      %36 = sbr.rel (0) target = $region13
    $region12: #{_mlp_call.1} parent=1 // pred_region
      _
    $region13: #{_mlp_call.1} parent=1 // pred_fallthru
      _
    // Predicated region
    $region14: #{_mlp_call.1} parent=1 // pred_check
      _
    $region15: #{_mlp_call.1} parent=1 // pred_check_branch
      %38 = sbr.rel (0) target = $region17
    $region16: #{_mlp_call.1} parent=1 // pred_region
      %s40 = ssub.s32 2048, 2048
      %41 = vsyncadd [#allocation6], %s40
      %s42 = sshll.u32 [#allocation7], 4
      %s43 = int_to_ptr.vmem [resolvable:$true] %s42
      %48 = dma.hbm_to_vmem [thread:$0]  %s3, 2048, %s43, [#allocation6], 128, 128, 8
    $region17: #{_mlp_call.1} parent=1 // pred_fallthru
      _
    // Predicated region
    $region18: #{_mlp_call.1} parent=1 // pred_check
      _
    $region19: #{_mlp_call.1} parent=1 // pred_check_branch
      %50 = sbr.rel (0) target = $region21
    $region20: #{_mlp_call.1} parent=1 // pred_region
      _
    $region21: #{_mlp_call.1} parent=1 // pred_fallthru
      _
    // Predicated region
    $region22: #{_mlp_call.1} parent=1 // pred_check
      _
    $region23: #{_mlp_call.1} parent=1 // pred_check_branch
      %52 = sbr.rel (0) target = $region25
    $region24: #{_mlp_call.1} parent=1 // pred_region
      %53 = dma.done [#allocation3], 128
    $region25: #{_mlp_call.1} parent=1 // pred_fallthru
      _
    // Predicated region
    $region26: #{_mlp_call.1} parent=1 // pred_check
      _
    $region27: #{_mlp_call.1} parent=1 // pred_check_branch
      %55 = sbr.rel (0) target = $region29
    $region28: #{_mlp_call.1} parent=1 // pred_region
      %56 = dma.done [#allocation6], 512
    $region29: #{_mlp_call.1} parent=1 // pred_fallthru
      _
    // Predicated region
    $region30: #{_mlp_call.1} parent=1 // pred_check
      _
    $region31: #{_mlp_call.1} parent=1 // pred_check_branch
      %58 = sbr.rel (0) target = $region33
    $region32: #{_mlp_call.1} parent=1 // pred_region
      %59 = dma.done [#allocation6], 2048
    $region33: #{_mlp_call.1} parent=1 // pred_fallthru
      _
    %v60 = vld [vmem:[#allocation2] sm:$0xff]
    %v61 = vld [vmem:[#allocation5] sm:$0xff]
    %v62 = vld [vmem:[#allocation5 + $0x8] sm:$0xff]
    %v63 = vld [vmem:[#allocation5 + $0x10] sm:$0xff]
    %v64 = vld [vmem:[#allocation5 + $0x18] sm:$0xff]
    %v65 = vld [vmem:[%s2] sm:$0x1]
    %v67 = vlaneseq
    %v68 = vshrl.u32 %v67, 7
    %v69 = vsub.s32 0, %v68
    %v70 = vrot.slane %v65, %v69
    %vm72 = vcmask 261120
    %v74 = vsel %vm72, %v60, 0
    %76 = vmatprep.subr.mxu0 0.0
    %77 = vmatpush1.msra.mxu0 %v61
    %78 = vmatprep.subr.mxu0 0.0
    %79 = vmatpush1.msra.mxu0 %v62
    %80 = vmatprep.subr.mxu0 0.0
    %81 = vmatpush1.msra.mxu0 %v63
    %82 = vmatprep.subr.mxu0 0.0
    %83 = vmatpush1.msra.mxu0 %v64
    %84 = vmatprep.subr.mxu0 0.0
    %85 = vmatpush1.msra.mxu0 0.0
    %86 = vmatprep.subr.mxu0 0.0
    %87 = vmatpush1.msra.mxu0 0.0
    %88 = vmatprep.subr.mxu0 0.0
    %89 = vmatpush1.msra.mxu0 0.0
    %90 = vmatprep.subr.mxu0 0.0
    %91 = vmatpush1.msra.mxu0 0.0
    %92 = vmatprep.subr.mxu0 0.0
    %93 = vmatpush1.msra.mxu0 0.0
    %94 = vmatprep.subr.mxu0 0.0
    %95 = vmatpush1.msra.mxu0 0.0
    %96 = vmatprep.subr.mxu0 0.0
    %97 = vmatpush1.msra.mxu0 0.0
    %98 = vmatprep.subr.mxu0 0.0
    %99 = vmatpush1.msra.mxu0 0.0
    %100 = vmatprep.subr.mxu0 0.0
    %101 = vmatpush1.msra.mxu0 0.0
    %102 = vmatprep.subr.mxu0 0.0
    %103 = vmatpush1.msra.mxu0 0.0
    %104 = vmatprep.subr.mxu0 0.0
    %105 = vmatpush1.msra.mxu0 0.0
    %106 = vmatprep.subr.mxu0 0.0
    %107 = vmatpush1.msra.mxu0 0.0
    %108 = vmatprep.subr.mxu0 0.0
    %109 = vmatpush1.msra.mxu0 0.0
    %110 = vmatprep.subr.mxu0 0.0
    %111 = vmatpush1.msra.mxu0 0.0
    %112 = vmatprep.subr.mxu0 0.0
    %113 = vmatpush1.msra.mxu0 0.0
    %114 = vmatprep.subr.mxu0 0.0
    %115 = vmatpush1.msra.mxu0 0.0
    %116 = vmatprep.subr.mxu0 0.0
    %117 = vmatpush1.msra.mxu0 0.0
    %118 = vmatprep.subr.mxu0 0.0
    %119 = vmatpush1.msra.mxu0 0.0
    %120 = vmatprep.subr.mxu0 0.0
    %121 = vmatpush1.msra.mxu0 0.0
    %122 = vmatprep.subr.mxu0 0.0
    %123 = vmatpush1.msra.mxu0 0.0
    %124 = vmatprep.subr.mxu0 0.0
    %125 = vmatpush1.msra.mxu0 0.0
    %126 = vmatprep.subr.mxu0 0.0
    %127 = vmatpush1.msra.mxu0 0.0
    %128 = vmatprep.subr.mxu0 0.0
    %129 = vmatpush1.msra.mxu0 0.0
    %130 = vmatprep.subr.mxu0 0.0
    %131 = vmatpush1.msra.mxu0 0.0
    %132 = vmatprep.subr.mxu0 0.0
    %133 = vmatpush1.msra.mxu0 0.0
    %134 = vmatprep.subr.mxu0 0.0
    %135 = vmatpush1.msra.mxu0 0.0
    %136 = vmatprep.subr.mxu0 0.0
    %137 = vmatpush1.msra.mxu0 0.0
    %138 = vmatprep.subr.mxu0 0.0
    %139 = vmatpush1.msra.mxu0 0.0
    %140 = vmatprep.mubr.f32.mxu0 0.0
    %141 = vmatmul.mubr.f32.gmra.mrb[0].mxu0 %v74
    %v142 = vpop.f32.mrb[0].mxu0
    %v143 = vadd.f32 %v70, %v142
    %v144 = vpop.f32.mrb[0].mxu0
    %145 = vdwg.mxu0
    %v146 = vmax.f32 %v143, 0.0
    %v147 = vld [vmem:[#allocation7] sm:$0xff]
    %v148 = vld [vmem:[#allocation7 + $0x8] sm:$0xff]
    %v149 = vld [vmem:[#allocation7 + $0x10] sm:$0xff]
    %v150 = vld [vmem:[#allocation7 + $0x18] sm:$0xff]
    %v151 = vld [vmem:[#allocation7 + $0x20] sm:$0xff]
    %v152 = vld [vmem:[#allocation7 + $0x28] sm:$0xff]
    %v153 = vld [vmem:[#allocation7 + $0x30] sm:$0xff]
    %v154 = vld [vmem:[#allocation7 + $0x38] sm:$0xff]
    %v155 = vld [vmem:[#allocation7 + $0x40] sm:$0xff]
    %v156 = vld [vmem:[#allocation7 + $0x48] sm:$0xff]
    %v157 = vld [vmem:[#allocation7 + $0x50] sm:$0xff]
    %v158 = vld [vmem:[#allocation7 + $0x58] sm:$0xff]
    %v159 = vld [vmem:[#allocation7 + $0x60] sm:$0xff]
    %v160 = vld [vmem:[#allocation7 + $0x68] sm:$0xff]
    %v161 = vld [vmem:[#allocation7 + $0x70] sm:$0xff]
    %v162 = vld [vmem:[#allocation7 + $0x78] sm:$0xff]
    %v163 = vld [vmem:[%s4] sm:$0x1]
    %v165 = vlaneseq
    %v166 = vshrl.u32 %v165, 7
    %v167 = vsub.s32 0, %v166
    %v168 = vrot.slane %v163, %v167
    %170 = vmatprep.subr.mxu0 0.0
    %171 = vmatpush1.msra.mxu0 %v147
    %172 = vmatprep.subr.mxu0 0.0
    %173 = vmatpush1.msra.mxu0 %v148
    %174 = vmatprep.subr.mxu0 0.0
    %175 = vmatpush1.msra.mxu0 %v149
    %176 = vmatprep.subr.mxu0 0.0
    %177 = vmatpush1.msra.mxu0 %v150
    %178 = vmatprep.subr.mxu0 0.0
    %179 = vmatpush1.msra.mxu0 %v151
    %180 = vmatprep.subr.mxu0 0.0
    %181 = vmatpush1.msra.mxu0 %v152
    %182 = vmatprep.subr.mxu0 0.0
    %183 = vmatpush1.msra.mxu0 %v153
    %184 = vmatprep.subr.mxu0 0.0
    %185 = vmatpush1.msra.mxu0 %v154
    %186 = vmatprep.subr.mxu0 0.0
    %187 = vmatpush1.msra.mxu0 %v155
    %188 = vmatprep.subr.mxu0 0.0
    %189 = vmatpush1.msra.mxu0 %v156
    %190 = vmatprep.subr.mxu0 0.0
    %191 = vmatpush1.msra.mxu0 %v157
    %192 = vmatprep.subr.mxu0 0.0
    %193 = vmatpush1.msra.mxu0 %v158
    %194 = vmatprep.subr.mxu0 0.0
    %195 = vmatpush1.msra.mxu0 %v159
    %196 = vmatprep.subr.mxu0 0.0
    %197 = vmatpush1.msra.mxu0 %v160
    %198 = vmatprep.subr.mxu0 0.0
    %199 = vmatpush1.msra.mxu0 %v161
    %200 = vmatprep.subr.mxu0 0.0
    %201 = vmatpush1.msra.mxu0 %v162
    %202 = vmatprep.subr.mxu0 0.0
    %203 = vmatpush1.msra.mxu0 0.0
    %204 = vmatprep.subr.mxu0 0.0
    %205 = vmatpush1.msra.mxu0 0.0
    %206 = vmatprep.subr.mxu0 0.0
    %207 = vmatpush1.msra.mxu0 0.0
    %208 = vmatprep.subr.mxu0 0.0
    %209 = vmatpush1.msra.mxu0 0.0
    %210 = vmatprep.subr.mxu0 0.0
    %211 = vmatpush1.msra.mxu0 0.0
    %212 = vmatprep.subr.mxu0 0.0
    %213 = vmatpush1.msra.mxu0 0.0
    %214 = vmatprep.subr.mxu0 0.0
    %215 = vmatpush1.msra.mxu0 0.0
    %216 = vmatprep.subr.mxu0 0.0
    %217 = vmatpush1.msra.mxu0 0.0
    %218 = vmatprep.subr.mxu0 0.0
    %219 = vmatpush1.msra.mxu0 0.0
    %220 = vmatprep.subr.mxu0 0.0
    %221 = vmatpush1.msra.mxu0 0.0
    %222 = vmatprep.subr.mxu0 0.0
    %223 = vmatpush1.msra.mxu0 0.0
    %224 = vmatprep.subr.mxu0 0.0
    %225 = vmatpush1.msra.mxu0 0.0
    %226 = vmatprep.subr.mxu0 0.0
    %227 = vmatpush1.msra.mxu0 0.0
    %228 = vmatprep.subr.mxu0 0.0
    %229 = vmatpush1.msra.mxu0 0.0
    %230 = vmatprep.subr.mxu0 0.0
    %231 = vmatpush1.msra.mxu0 0.0
    %232 = vmatprep.subr.mxu0 0.0
    %233 = vmatpush1.msra.mxu0 0.0
    %234 = vmatprep.mubr.f32.mxu0 0.0
    %235 = vmatmul.mubr.f32.gmra.mrb[0].mxu0 %v146
    %v236 = vpop.f32.mrb[0].mxu0
    %v237 = vadd.f32 %v168, %v236
    %v238 = vpop.f32.mrb[0].mxu0
    %239 = vdwg.mxu0
    %240 = vst [vmem:[#allocation8] sm:$0xff] %v237
    // Predicated region
    $region34: #{_mlp_call.1} parent=1 // pred_check
      _
    $region35: #{_mlp_call.1} parent=1 // pred_check_branch
      %242 = sbr.rel (0) target = $region37
    $region36: #{_mlp_call.1} parent=1 // pred_region
      %s244 = ssub.s32 128, 128
      %245 = vsyncadd [#allocation4], %s244
      %s247 = sshll.u32 [#allocation8], 4
      %s248 = int_to_ptr.vmem [resolvable:$true] %s247
      %250 = dma.vmem_to_hbm [thread:$0]  %s248, 128, %s5, [#allocation4]
    $region37: #{_mlp_call.1} parent=1 // pred_fallthru
      _
    // Predicated region
    $region38: #{_mlp_call.1} parent=1 // pred_check
      _
    $region39: #{_mlp_call.1} parent=1 // pred_check_branch
      %252 = sbr.rel (0) target = $region41
    $region40: #{_mlp_call.1} parent=1 // pred_region
      %253 = dma.done [#allocation4], 128
    $region41: #{_mlp_call.1} parent=1 // pred_fallthru
      _
    %254 = vsyncpa [#allocation3], 1
    %255 = vsyncpa [#allocation6], 1
    %256 = vsyncpa [#allocation4], 1

</llo_original>
